<compile_context>
chip_gen: v6e
topology: v6e:2x2x1
jax: 0.10.0
libtpu: 0.0.40
codegen_flags: <defaults>
</compile_context>

<pallas_src>
import jax
import jax.numpy as jnp
from jax.experimental import pallas as pl
from jax.experimental.pallas import tpu as pltpu


def svm_kernel(scale_ref, bias_ref, x_ref, w_ref, out_ref):
    # scale_ref, bias_ref: (1, 1) SMEM scalars
    # x_ref  : (TILE_N, F) VMEM  (native layout, rows on sublanes)
    # w_ref  : (1, F)      VMEM  (resident; broadcast over the row axis)
    # out_ref: (TILE_N, 1) VMEM
    diff = x_ref[...] - w_ref[...]                       # (TILE_N, F)
    s = jnp.sum(diff * diff, axis=1, keepdims=True)      # (TILE_N, 1)
    out_ref[...] = jnp.exp(s * scale_ref[0, 0]) - bias_ref[0, 0]


def svm_forward(x, weight, bias, gamma, *, tile_n=None):
    """x: (N, F) f32, weight: (F,) f32, bias: (1,) f32, gamma: scalar."""
    n, f = x.shape
    row_bytes = 4 * f

    if tile_n is None:
        # ~4 MiB per X block: amortizes per-grid-step overhead and saturates
        # HBM on v5e/v6e/v7x while 2x double-buffered blocks stay far below
        # the scoped-VMEM defaults (16/32/32 MiB) and v7x's 64 MiB physical.
        target_bytes = 4 << 20
        rows = max(128, target_bytes // max(1, row_bytes))
        tile_n = max(128, (rows // 128) * 128)
        # Keep >= 4 grid steps for large N so both v7x TensorCores get work.
        quarter = ((n + 4 * 128 - 1) // (4 * 128)) * 128
        tile_n = min(tile_n, max(128, quarter))

    # Round any (possibly user-supplied) tile to a lane multiple; don't
    # allocate more than one block's worth beyond N.
    tile_n = max(128, (int(tile_n) // 128) * 128)
    tile_n = min(tile_n, max(128, pl.cdiv(n, 128) * 128))

    grid = (pl.cdiv(n, tile_n),)   # ragged last block masked by Pallas

    x = x.astype(jnp.float32)
    w2d = weight.reshape(1, f).astype(jnp.float32)
    # Precompute -1 / (2 * gamma^2) once on the host.
    scale = jnp.asarray(-1.0 / (2.0 * gamma * gamma), jnp.float32).reshape(1, 1)
    bias_arr = jnp.asarray(bias, jnp.float32).reshape(1, 1)

    out = pl.pallas_call(
        svm_kernel,
        out_shape=jax.ShapeDtypeStruct((n, 1), jnp.float32),
        grid_spec=pl.GridSpec(
            grid=grid,
            in_specs=[
                pl.BlockSpec(memory_space=pltpu.SMEM),           # scale scalar
                pl.BlockSpec(memory_space=pltpu.SMEM),           # bias scalar
                pl.BlockSpec((tile_n, f), lambda i: (i, 0)),     # X row tile
                pl.BlockSpec((1, f), lambda i: (0, 0)),          # weight (resident)
            ],
            out_specs=pl.BlockSpec((tile_n, 1), lambda i: (i, 0)),
        ),
        compiler_params=pltpu.CompilerParams(
            dimension_semantics=("parallel",),
        ),
    )(scale, bias_arr, x, w2d)
    return out[:, 0]                                      # (N,)


if __name__ == "__main__":
    key = jax.random.PRNGKey(0)
    k_x, k_w = jax.random.split(key)

    N, F = 8, 32
    x = jax.random.normal(k_x, (N, F), dtype=jnp.float32)
    # nn.init.uniform_(weight, -0.5, 0.5)
    weight = jax.random.uniform(k_w, (F,), minval=-0.5, maxval=0.5, dtype=jnp.float32)
    # nn.init.zeros_(bias)
    bias = jnp.zeros((1,), dtype=jnp.float32)
    gamma = 1.5

    out = svm_forward(x, weight, bias, gamma)
    jax.block_until_ready(out)

    # Pure-JAX reference check
    ref = jnp.exp(jnp.sum((x - weight) ** 2, axis=1) / (-2.0 * gamma * gamma)) - bias[0]
    assert out.shape == (N,)
    assert jnp.allclose(out, ref, atol=1e-5, rtol=1e-5), (out, ref)

    print("KERNEL_OK")
</pallas_src>

<mosaic_0001>
module attributes {stable_mosaic.version = 11 : i64} {
  func.func @svm_kernel(%arg0: i32, %arg1: memref<1x1xf32, #tpu.memory_space<smem>>, %arg2: memref<1x1xf32, #tpu.memory_space<smem>>, %arg3: memref<128x32xf32, #tpu.memory_space<vmem>>, %arg4: memref<1x32xf32, #tpu.memory_space<vmem>>, %arg5: memref<128x1xf32, #tpu.memory_space<vmem>>) attributes {dimension_semantics = [#tpu.dimension_semantics<parallel>], iteration_bounds = array<i64: 1>, scalar_prefetch = 0 : i64, scratch_operands = 0 : i64, tpu.core_type = #tpu.core_type<tc>, window_params = [{transform_indices = @transform_0, window_bounds = array<i64: 1, 1>}, {transform_indices = @transform_1, window_bounds = array<i64: 1, 1>}, {transform_indices = @transform_2, window_bounds = array<i64: 128, 32>}, {pipeline_mode = #tpu.pipeline_mode<synchronous>, transform_indices = @transform_3, window_bounds = array<i64: 1, 32>}, {transform_indices = @transform_4, window_bounds = array<i64: 128, 1>}]} {
    %c0 = arith.constant 0 : index
    %c0_0 = arith.constant 0 : index
    %0 = vector.load %arg3[%c0, %c0_0] : memref<128x32xf32, #tpu.memory_space<vmem>>, vector<128x32xf32>
    %c0_1 = arith.constant 0 : index
    %c0_2 = arith.constant 0 : index
    %1 = vector.load %arg4[%c0_1, %c0_2] : memref<1x32xf32, #tpu.memory_space<vmem>>, vector<1x32xf32>
    %2 = vector.broadcast %1 : vector<1x32xf32> to vector<128x32xf32>
    %3 = arith.subf %0, %2 : vector<128x32xf32>
    %4 = arith.mulf %3, %3 : vector<128x32xf32>
    %cst = arith.constant dense<0.000000e+00> : vector<128xf32>
    %5 = vector.multi_reduction <add>, %4, %cst [1] : vector<128x32xf32> to vector<128xf32>
    %6 = vector.shape_cast %5 : vector<128xf32> to vector<128x1xf32>
    %c0_3 = arith.constant 0 : index
    %c0_4 = arith.constant 0 : index
    %7 = memref.load %arg1[%c0_3, %c0_4] : memref<1x1xf32, #tpu.memory_space<smem>>
    %8 = vector.broadcast %7 : f32 to vector<128x1xf32>
    %9 = arith.mulf %6, %8 : vector<128x1xf32>
    %10 = math.exp %9 : vector<128x1xf32>
    %c0_5 = arith.constant 0 : index
    %c0_6 = arith.constant 0 : index
    %11 = memref.load %arg2[%c0_5, %c0_6] : memref<1x1xf32, #tpu.memory_space<smem>>
    %12 = vector.broadcast %11 : f32 to vector<128x1xf32>
    %13 = arith.subf %10, %12 : vector<128x1xf32>
    %c0_7 = arith.constant 0 : index
    %c0_8 = arith.constant 0 : index
    %14 = vector.load %arg5[%c0_7, %c0_8] : memref<128x1xf32, #tpu.memory_space<vmem>>, vector<128x1xf32>
    tpu.vector_store %arg5[%c0_7, %c0_8], %13 {strides = array<i32>} : memref<128x1xf32, #tpu.memory_space<vmem>>, vector<128x1xf32>,
    return
  }
  func.func @transform_0(%arg0: i32) -> (i32, i32) {
    %c0_i32 = arith.constant 0 : i32
    %c0_i32_0 = arith.constant 0 : i32
    %c0_i32_1 = arith.constant 0 : i32
    return %c0_i32, %c0_i32_0 : i32, i32
  }
  func.func @transform_1(%arg0: i32) -> (i32, i32) {
    %c0_i32 = arith.constant 0 : i32
    %c0_i32_0 = arith.constant 0 : i32
    %c0_i32_1 = arith.constant 0 : i32
    return %c0_i32, %c0_i32_0 : i32, i32
  }
  func.func @transform_2(%arg0: i32) -> (i32, i32) {
    %c0_i32 = arith.constant 0 : i32
    %c0_i32_0 = arith.constant 0 : i32
    return %arg0, %c0_i32 : i32, i32
  }
  func.func @transform_3(%arg0: i32) -> (i32, i32) {
    %c0_i32 = arith.constant 0 : i32
    %c0_i32_0 = arith.constant 0 : i32
    %c0_i32_1 = arith.constant 0 : i32
    return %c0_i32, %c0_i32_0 : i32, i32
  }
  func.func @transform_4(%arg0: i32) -> (i32, i32) {
    %c0_i32 = arith.constant 0 : i32
    %c0_i32_0 = arith.constant 0 : i32
    return %arg0, %c0_i32 : i32, i32
  }
}

</mosaic_0001>

<llo_original>
// kernel: tpu_custom_call.1
$region0: #{tpu_custom_call.1}
  #allocation0 [shape = 'u32[]', space=smem, size = 0x4, offset = 0x4, fixed_abs, tag = 'smem constant byte address 0x4 - core index']
  #allocation1 [shape = 'u32[144,128]{1,0:T(1,128)}', space=vmem, size = 0x12000, scoped, tag = 'internal scratch']
  #allocation2 [shape = 'f32[1,1]{1,0:T(1,128)S(6)}', space=smem, size = 0x200, scoped, tag = 'scoped memory for tpu_custom_call.1']
  #allocation3 [shape = 'f32[1,1]{1,0:T(1,128)S(6)}', space=smem, size = 0x200, scoped, tag = 'scoped memory for tpu_custom_call.1']
  %s0 = inlined_call_operand.<no memory space> [shape: f32[1,1], index: 0, kind: input, shape index: {}]
  %s1 = inlined_call_operand.<no memory space> [shape: f32[1,1], index: 1, kind: input, shape index: {}]
  %s2 = inlined_call_operand.hbm [shape: f32[8,32], index: 2, kind: input, shape index: {}]
  %s3 = inlined_call_operand.vmem [shape: f32[1,32], index: 3, kind: input, shape index: {}]
  %s4 = inlined_call_operand.vmem [shape: f32[8,1], index: 4, kind: output, shape index: {}]
  %s5 = sld [smem:[#allocation0]]
  $region64: #{tpu_custom_call.1} parent=0
    _
  %s7 = ssub.s32 1, %s5
  %s8 = scalar_select 0, %s7, %s5
  %9 = sst [smem:[#allocation2]] %s0
  %10 = sst [smem:[#allocation3]] %s1
  $region1: #{tpu_custom_call.1} parent=0
    #allocation4 [shape = 'u8[65536]{0}', space=vmem, size = 0x10000, scoped, tag = 'input window, operand 2, single buffered']
    #allocation5 [shape = 's32[1]{0}', space=sflag, size = 0x4, scoped, tag = 'scoped memory for tpu_custom_call.1']
    #allocation6 [shape = 'u8[65536]{0}', space=vmem, size = 0x10000, scoped, tag = 'output window, operand 0, single buffered']
    %11 = vsyncpa [#allocation5], 0
    // Predicated region
    $region2: #{tpu_custom_call.1} parent=1 // pred_check
      _
    $region3: #{tpu_custom_call.1} parent=1 // pred_check_branch
      %13 = sbr.rel (0) target = $region5
    $region4: #{tpu_custom_call.1} parent=1 // pred_region
      _
    $region5: #{tpu_custom_call.1} parent=1 // pred_fallthru
      _
    // Predicated region
    $region6: #{tpu_custom_call.1} parent=1 // pred_check
      _
    $region7: #{tpu_custom_call.1} parent=1 // pred_check_branch
      %15 = sbr.rel (0) target = $region9
    $region8: #{tpu_custom_call.1} parent=1 // pred_region
      _
    $region9: #{tpu_custom_call.1} parent=1 // pred_fallthru
      _
    // Predicated region
    $region10: #{tpu_custom_call.1} parent=1 // pred_check
      _
    $region11: #{tpu_custom_call.1} parent=1 // pred_check_branch
      %17 = sbr.rel (0) target = $region13
    $region12: #{tpu_custom_call.1} parent=1 // pred_region
      %s19 = ssub.s32 2048, 128
      %20 = vsyncadd [#allocation5], %s19
      %s21 = sshll.u32 [#allocation4], 4
      %s22 = int_to_ptr.vmem [resolvable:$true] %s21
      %27 = dma.hbm_to_vmem [thread:$0]  %s2, 128, %s22, [#allocation5], 128, 128, 8
    $region13: #{tpu_custom_call.1} parent=1 // pred_fallthru
      _
    // Predicated region
    $region14: #{tpu_custom_call.1} parent=1 // pred_check
      _
    $region15: #{tpu_custom_call.1} parent=1 // pred_check_branch
      %29 = sbr.rel (0) target = $region17
    $region16: #{tpu_custom_call.1} parent=1 // pred_region
      _
    $region17: #{tpu_custom_call.1} parent=1 // pred_fallthru
      _
    // Predicated region
    $region18: #{tpu_custom_call.1} parent=1 // pred_check
      _
    $region19: #{tpu_custom_call.1} parent=1 // pred_check_branch
      %31 = sbr.rel (0) target = $region21
    $region20: #{tpu_custom_call.1} parent=1 // pred_region
      %32 = dma.done [#allocation5], 2048
    $region21: #{tpu_custom_call.1} parent=1 // pred_fallthru
      _
    %v33 = vld [vmem:[#allocation4] sm:$0xff]
    %v34 = vld [vmem:[#allocation4 + $0x8] sm:$0xff]
    %v35 = vld [vmem:[#allocation4 + $0x10] sm:$0xff]
    %v36 = vld [vmem:[#allocation4 + $0x18] sm:$0xff]
    %v37 = vld [vmem:[#allocation4 + $0x20] sm:$0xff]
    %v38 = vld [vmem:[#allocation4 + $0x28] sm:$0xff]
    %v39 = vld [vmem:[#allocation4 + $0x30] sm:$0xff]
    %v40 = vld [vmem:[#allocation4 + $0x38] sm:$0xff]
    %v41 = vld [vmem:[#allocation4 + $0x40] sm:$0xff]
    %v42 = vld [vmem:[#allocation4 + $0x48] sm:$0xff]
    %v43 = vld [vmem:[#allocation4 + $0x50] sm:$0xff]
    %v44 = vld [vmem:[#allocation4 + $0x58] sm:$0xff]
    %v45 = vld [vmem:[#allocation4 + $0x60] sm:$0xff]
    %v46 = vld [vmem:[#allocation4 + $0x68] sm:$0xff]
    %v47 = vld [vmem:[#allocation4 + $0x70] sm:$0xff]
    %v48 = vld [vmem:[#allocation4 + $0x78] sm:$0xff]
    %v49 = vld [vmem:[%s3] sm:$0x1]
    %v51 = vlaneseq
    %v52 = vshrl.u32 %v51, 7
    %v53 = vsub.s32 0, %v52
    %v54 = vrot.slane %v49, %v53
    %v56 = vsub.f32 %v33, %v54
    %v57 = vsub.f32 %v34, %v54
    %v58 = vsub.f32 %v35, %v54
    %v59 = vsub.f32 %v36, %v54
    %v60 = vsub.f32 %v37, %v54
    %v61 = vsub.f32 %v38, %v54
    %v62 = vsub.f32 %v39, %v54
    %v63 = vsub.f32 %v40, %v54
    %v64 = vsub.f32 %v41, %v54
    %v65 = vsub.f32 %v42, %v54
    %v66 = vsub.f32 %v43, %v54
    %v67 = vsub.f32 %v44, %v54
    %v68 = vsub.f32 %v45, %v54
    %v69 = vsub.f32 %v46, %v54
    %v70 = vsub.f32 %v47, %v54
    %v71 = vsub.f32 %v48, %v54
    %v72 = vmul.f32 %v56, %v56
    %v73 = vmul.f32 %v57, %v57
    %v74 = vmul.f32 %v58, %v58
    %v75 = vmul.f32 %v59, %v59
    %v76 = vmul.f32 %v60, %v60
    %v77 = vmul.f32 %v61, %v61
    %v78 = vmul.f32 %v62, %v62
    %v79 = vmul.f32 %v63, %v63
    %v80 = vmul.f32 %v64, %v64
    %v81 = vmul.f32 %v65, %v65
    %v82 = vmul.f32 %v66, %v66
    %v83 = vmul.f32 %v67, %v67
    %v84 = vmul.f32 %v68, %v68
    %v85 = vmul.f32 %v69, %v69
    %v86 = vmul.f32 %v70, %v70
    %v87 = vmul.f32 %v71, %v71
    %vm88 = vcmask 261120
    %v89 = vsel %vm88, %v72, 0.0
    %90 = vadd.xlane.f32.xlu0 %v89
    %v91 = vpop.xlane.xlu0 %90
    %v92 = vsel %vm88, %v73, 0.0
    %93 = vadd.xlane.f32.xlu0 %v92
    %v94 = vpop.xlane.xlu0 %93
    %v95 = vsel %vm88, %v74, 0.0
    %96 = vadd.xlane.f32.xlu0 %v95
    %v97 = vpop.xlane.xlu0 %96
    %v98 = vsel %vm88, %v75, 0.0
    %99 = vadd.xlane.f32.xlu0 %v98
    %v100 = vpop.xlane.xlu0 %99
    %v101 = vsel %vm88, %v76, 0.0
    %102 = vadd.xlane.f32.xlu0 %v101
    %v103 = vpop.xlane.xlu0 %102
    %v104 = vsel %vm88, %v77, 0.0
    %105 = vadd.xlane.f32.xlu0 %v104
    %v106 = vpop.xlane.xlu0 %105
    %v107 = vsel %vm88, %v78, 0.0
    %108 = vadd.xlane.f32.xlu0 %v107
    %v109 = vpop.xlane.xlu0 %108
    %v110 = vsel %vm88, %v79, 0.0
    %111 = vadd.xlane.f32.xlu0 %v110
    %v112 = vpop.xlane.xlu0 %111
    %v113 = vsel %vm88, %v80, 0.0
    %114 = vadd.xlane.f32.xlu0 %v113
    %v115 = vpop.xlane.xlu0 %114
    %v116 = vsel %vm88, %v81, 0.0
    %117 = vadd.xlane.f32.xlu0 %v116
    %v118 = vpop.xlane.xlu0 %117
    %v119 = vsel %vm88, %v82, 0.0
    %120 = vadd.xlane.f32.xlu0 %v119
    %v121 = vpop.xlane.xlu0 %120
    %v122 = vsel %vm88, %v83, 0.0
    %123 = vadd.xlane.f32.xlu0 %v122
    %v124 = vpop.xlane.xlu0 %123
    %v125 = vsel %vm88, %v84, 0.0
    %126 = vadd.xlane.f32.xlu0 %v125
    %v127 = vpop.xlane.xlu0 %126
    %v128 = vsel %vm88, %v85, 0.0
    %129 = vadd.xlane.f32.xlu0 %v128
    %v130 = vpop.xlane.xlu0 %129
    %v131 = vsel %vm88, %v86, 0.0
    %132 = vadd.xlane.f32.xlu0 %v131
    %v133 = vpop.xlane.xlu0 %132
    %v134 = vsel %vm88, %v87, 0.0
    %135 = vadd.xlane.f32.xlu0 %v134
    %v136 = vpop.xlane.xlu0 %135
    %s137 = sld [smem:[#allocation2]]
    %v138 = vstv %s137
    %v139 = vmul.f32 %v91, %v138
    %v140 = vmul.f32 %v94, %v138
    %v141 = vmul.f32 %v97, %v138
    %v142 = vmul.f32 %v100, %v138
    %v143 = vmul.f32 %v103, %v138
    %v144 = vmul.f32 %v106, %v138
    %v145 = vmul.f32 %v109, %v138
    %v146 = vmul.f32 %v112, %v138
    %v147 = vmul.f32 %v115, %v138
    %v148 = vmul.f32 %v118, %v138
    %v149 = vmul.f32 %v121, %v138
    %v150 = vmul.f32 %v124, %v138
    %v151 = vmul.f32 %v127, %v138
    %v152 = vmul.f32 %v130, %v138
    %v153 = vmul.f32 %v133, %v138
    %v154 = vmul.f32 %v136, %v138
    %v155 = vmul.f32 %v139, 1.442695
    %v156 = vpow.pop %v155
    %v157 = vmul.f32 %v140, 1.442695
    %v158 = vpow.pop %v157
    %v159 = vmul.f32 %v141, 1.442695
    %v160 = vpow.pop %v159
    %v161 = vmul.f32 %v142, 1.442695
    %v162 = vpow.pop %v161
    %v163 = vmul.f32 %v143, 1.442695
    %v164 = vpow.pop %v163
    %v165 = vmul.f32 %v144, 1.442695
    %v166 = vpow.pop %v165
    %v167 = vmul.f32 %v145, 1.442695
    %v168 = vpow.pop %v167
    %v169 = vmul.f32 %v146, 1.442695
    %v170 = vpow.pop %v169
    %v171 = vmul.f32 %v147, 1.442695
    %v172 = vpow.pop %v171
    %v173 = vmul.f32 %v148, 1.442695
    %v174 = vpow.pop %v173
    %v175 = vmul.f32 %v149, 1.442695
    %v176 = vpow.pop %v175
    %v177 = vmul.f32 %v150, 1.442695
    %v178 = vpow.pop %v177
    %v179 = vmul.f32 %v151, 1.442695
    %v180 = vpow.pop %v179
    %v181 = vmul.f32 %v152, 1.442695
    %v182 = vpow.pop %v181
    %v183 = vmul.f32 %v153, 1.442695
    %v184 = vpow.pop %v183
    %v185 = vmul.f32 %v154, 1.442695
    %v186 = vpow.pop %v185
    %s187 = sld [smem:[#allocation3]]
    %v188 = vstv %s187
    %v189 = vsub.f32 %v156, %v188
    %v190 = vsub.f32 %v158, %v188
    %v191 = vsub.f32 %v160, %v188
    %v192 = vsub.f32 %v162, %v188
    %v193 = vsub.f32 %v164, %v188
    %v194 = vsub.f32 %v166, %v188
    %v195 = vsub.f32 %v168, %v188
    %v196 = vsub.f32 %v170, %v188
    %v197 = vsub.f32 %v172, %v188
    %v198 = vsub.f32 %v174, %v188
    %v199 = vsub.f32 %v176, %v188
    %v200 = vsub.f32 %v178, %v188
    %v201 = vsub.f32 %v180, %v188
    %v202 = vsub.f32 %v182, %v188
    %v203 = vsub.f32 %v184, %v188
    %v204 = vsub.f32 %v186, %v188
    %vm205 = vcmask 7168
    %206 = vst.msk [vmem:[#allocation6] sm:$0xff] %vm205, %v189
    %207 = vst.msk [vmem:[#allocation6 + $0x8] sm:$0xff] %vm205, %v190
    %208 = vst.msk [vmem:[#allocation6 + $0x10] sm:$0xff] %vm205, %v191
    %209 = vst.msk [vmem:[#allocation6 + $0x18] sm:$0xff] %vm205, %v192
    %210 = vst.msk [vmem:[#allocation6 + $0x20] sm:$0xff] %vm205, %v193
    %211 = vst.msk [vmem:[#allocation6 + $0x28] sm:$0xff] %vm205, %v194
    %212 = vst.msk [vmem:[#allocation6 + $0x30] sm:$0xff] %vm205, %v195
    %213 = vst.msk [vmem:[#allocation6 + $0x38] sm:$0xff] %vm205, %v196
    %214 = vst.msk [vmem:[#allocation6 + $0x40] sm:$0xff] %vm205, %v197
    %215 = vst.msk [vmem:[#allocation6 + $0x48] sm:$0xff] %vm205, %v198
    %216 = vst.msk [vmem:[#allocation6 + $0x50] sm:$0xff] %vm205, %v199
    %217 = vst.msk [vmem:[#allocation6 + $0x58] sm:$0xff] %vm205, %v200
    %218 = vst.msk [vmem:[#allocation6 + $0x60] sm:$0xff] %vm205, %v201
    %219 = vst.msk [vmem:[#allocation6 + $0x68] sm:$0xff] %vm205, %v202
    %220 = vst.msk [vmem:[#allocation6 + $0x70] sm:$0xff] %vm205, %v203
    %221 = vst.msk [vmem:[#allocation6 + $0x78] sm:$0xff] %vm205, %v204
    // Predicated region
    $region22: #{tpu_custom_call.1} parent=1 // pred_check
      _
    $region23: #{tpu_custom_call.1} parent=1 // pred_check_branch
      %223 = sbr.rel (0) target = $region25
    $region24: #{tpu_custom_call.1} parent=1 // pred_region
      // Predicated region
      $region26: #{tpu_custom_call.1} parent=24 // pred_check
        _
      $region27: #{tpu_custom_call.1} parent=24 // pred_check_branch
        %225 = sbr.rel (0) target = $region29
      $region28: #{tpu_custom_call.1} parent=24 // pred_region
        // Predicated region
        $region30: #{tpu_custom_call.1} parent=28 // pred_check
          _
        $region31: #{tpu_custom_call.1} parent=28 // pred_check_branch
          %227 = sbr.rel (0) target = $region33
        $region32: #{tpu_custom_call.1} parent=28 // pred_region
          // Predicated region
          $region45: #{tpu_custom_call.1} parent=32 // pred_check
            _
          $region46: #{tpu_custom_call.1} parent=32 // pred_check_branch
            %243 = sbr.rel (0) target = $region48
          $region47: #{tpu_custom_call.1} parent=32 // pred_region
            loop: start=0, step=1, limit=1
            $region49: #{tpu_custom_call.1} parent=47 // loop_pre_header
              _
            $region50: #{tpu_custom_call.1} parent=47 // loop_header
              %s245 = sphi 0, %s249
              %p246 = scmp.ge.s32.totalorder %s245, 1
              %s250 = sphi [#allocation6], [#allocation6]
              %s251 = sphi %s4, %s4
            $region51: #{tpu_custom_call.1} parent=47 // loop_header_branch
              %248 = sbr.rel (%p246) target = $region55
            $region52: #{tpu_custom_call.1} parent=47 // loop_body
              %v252 = vld [vmem:[%s250] sm:$0xff]
              %253 = vst [vmem:[%s251] sm:$0xff] %v252
            $region53: #{tpu_custom_call.1} parent=47 // loop_footer
              %s249 = sadd.s32 1, %s245
            $region54: #{tpu_custom_call.1} parent=47 // loop_footer_branch
              %244 = sbr.rel target = $region50
            $region55: #{tpu_custom_call.1} parent=47 // loop_exit
              _
          $region48: #{tpu_custom_call.1} parent=32 // pred_fallthru
            _
          // Predicated region
          $region56: #{tpu_custom_call.1} parent=32 // pred_check
            _
          $region57: #{tpu_custom_call.1} parent=32 // pred_check_branch
            %255 = sbr.rel target = $region59
          $region58: #{tpu_custom_call.1} parent=32 // pred_region
            _
          $region59: #{tpu_custom_call.1} parent=32 // pred_fallthru
            _
        $region33: #{tpu_custom_call.1} parent=28 // pred_fallthru
          _
        // Predicated region
        $region34: #{tpu_custom_call.1} parent=28 // pred_check
          _
        $region35: #{tpu_custom_call.1} parent=28 // pred_check_branch
          %229 = sbr.rel target = $region37
        $region36: #{tpu_custom_call.1} parent=28 // pred_region
          %s231 = ssub.s32 256, 1
          loop: start=0, step=1, limit=1
          $region38: #{tpu_custom_call.1} parent=36 // loop_pre_header
            _
          $region39: #{tpu_custom_call.1} parent=36 // loop_header
            %s233 = sphi 0, %s237
            %p234 = scmp.ge.s32.totalorder %s233, 1
            %s238 = sphi [#allocation6], [#allocation6]
            %s239 = sphi %s4, %s4
          $region40: #{tpu_custom_call.1} parent=36 // loop_header_branch
            %236 = sbr.rel (%p234) target = $region44
          $region41: #{tpu_custom_call.1} parent=36 // loop_body
            %v240 = vld [vmem:[%s238] sm:%s231]
            %241 = vst [vmem:[%s239] sm:%s231] %v240
          $region42: #{tpu_custom_call.1} parent=36 // loop_footer
            %s237 = sadd.s32 1, %s233
          $region43: #{tpu_custom_call.1} parent=36 // loop_footer_branch
            %232 = sbr.rel target = $region39
          $region44: #{tpu_custom_call.1} parent=36 // loop_exit
            _
        $region37: #{tpu_custom_call.1} parent=28 // pred_fallthru
          _
      $region29: #{tpu_custom_call.1} parent=24 // pred_fallthru
        _
      %256 = vnop
    $region25: #{tpu_custom_call.1} parent=1 // pred_fallthru
      _
    // Predicated region
    $region60: #{tpu_custom_call.1} parent=1 // pred_check
      _
    $region61: #{tpu_custom_call.1} parent=1 // pred_check_branch
      %258 = sbr.rel (0) target = $region63
    $region62: #{tpu_custom_call.1} parent=1 // pred_region
      _
    $region63: #{tpu_custom_call.1} parent=1 // pred_fallthru
      _
    %259 = vsyncpa [#allocation5], 1

</llo_original>
